<compile_context>
chip_gen: v7x
topology: tpu7x:2x2x1
jax: 0.10.0
libtpu: 0.0.40
codegen_flags: <defaults>
</compile_context>

<pallas_src>
import math

import jax
import jax.numpy as jnp
from jax.experimental import pallas as pl
from jax.experimental.pallas import tpu as pltpu

_INV_SQRT2 = 1.0 / math.sqrt(2.0)


# --------------------------------------------------------------------------- #
# Kernel bodies
# --------------------------------------------------------------------------- #
def _ff_partial(x_ref, w1_ref, b1_ref, w2_ref):
    """One hidden-tile's contribution to fc2(gelu(fc1(x))), f32 accumulate."""
    # fc1 partial over this hidden tile: (tm, dim) @ (dim, th) + (1, th)
    h = jnp.dot(x_ref[...], w1_ref[...], preferred_element_type=jnp.float32)
    h = h + b1_ref[...].astype(jnp.float32)

    # exact (erf) GELU in f32, matching torch.nn.GELU() default.
    # TODO(synk): if profiling shows VALU-bound for small dim, switch to the
    # tanh-approx GELU (routes to the EUP slot) at a small numerics delta.
    h = 0.5 * h * (1.0 + jax.lax.erf(h * _INV_SQRT2))

    # dropout(p=0.0) is the identity -> nothing to do.

    # Cast back to the weight dtype so the 2nd matmul uses the native MXU path
    # (bf16 x bf16 -> f32 accumulate) instead of multi-pass f32 emulation.
    h = h.astype(w2_ref.dtype)

    # fc2 partial: (tm, th) @ (th, dim), accumulated in f32 by the caller.
    return jnp.dot(h, w2_ref[...], preferred_element_type=jnp.float32)


def _ff_kernel_scratch(x_ref, w1_ref, b1_ref, w2_ref, b2_ref, o_ref, acc_ref):
    """Variant with an f32 VMEM accumulator (used when o_ref is not f32)."""
    k = pl.program_id(1)  # hidden-tile index (reduction axis for fc2)

    @pl.when(k == 0)
    def _init():
        acc_ref[...] = jnp.zeros_like(acc_ref)

    acc_ref[...] += _ff_partial(x_ref, w1_ref, b1_ref, w2_ref)

    @pl.when(k == pl.num_programs(1) - 1)
    def _finalize():
        y = acc_ref[...] + b2_ref[...].astype(jnp.float32)
        o_ref[...] = y.astype(o_ref.dtype)


def _ff_kernel_f32out(x_ref, w1_ref, b1_ref, w2_ref, b2_ref, o_ref):
    """Variant that accumulates directly into the (f32, k-resident) output."""
    k = pl.program_id(1)

    @pl.when(k == 0)
    def _init():
        o_ref[...] = jnp.zeros_like(o_ref)

    o_ref[...] += _ff_partial(x_ref, w1_ref, b1_ref, w2_ref)

    @pl.when(k == pl.num_programs(1) - 1)
    def _finalize():
        o_ref[...] = o_ref[...] + b2_ref[...].astype(jnp.float32)


# --------------------------------------------------------------------------- #
# Hardware-aware sizing helpers
# --------------------------------------------------------------------------- #
def _tpu_generation():
    """Return (gen_name, vmem_capacity_bytes, num_tensorcores_per_chip)."""
    kind = ""
    try:
        kind = jax.devices()[0].device_kind.lower()
    except Exception:
        pass

    vmem_cap = None
    try:
        vmem_cap = int(pltpu.get_tpu_info().vmem_capacity_bytes)
    except Exception:
        vmem_cap = None

    if "v7" in kind:
        gen, num_tc = "v7x", 2
    elif "v6" in kind:
        gen, num_tc = "v6e", 1
    elif "v5 lite" in kind or "v5lite" in kind or "v5e" in kind:
        gen, num_tc = "v5e", 1
    else:
        gen, num_tc = "unknown", 1

    if vmem_cap is None:
        # Conservative fallbacks: 64 MiB (v7x / unknown), 128 MiB (v5e/v6e).
        vmem_cap = (64 if gen in ("v7x", "unknown") else 128) * 1024 * 1024
    return gen, vmem_cap, num_tc


def _gen_defaults(gen):
    """(block_m, block_h, mxu_align, vmem_headroom_frac) per generation."""
    if gen == "v7x":
        return 512, 512, 256, 0.75     # 64 MiB VMEM, ridge ~310 flop/B
    if gen == "v6e":
        return 1024, 512, 256, 0.80    # ridge ~650 flop/B -> big M tiles
    if gen == "v5e":
        return 512, 512, 128, 0.80     # ridge ~240 flop/B, 128-wide MXU
    return 512, 512, 256, 0.75         # unknown: conservative


def _aligned_divisors(hidden, max_th, align):
    """Divisors of `hidden` that are multiples of `align`, descending, <= max_th."""
    out = []
    t = (min(max_th, hidden) // align) * align
    while t >= align:
        if hidden % t == 0:
            out.append(t)
        t -= align
    return out


def _vmem_need(tm, th, dim, x_sz, w_sz, out_sz, use_acc_scratch):
    need = (2 * tm * dim * x_sz        # x tiles (double buffered)
            + 2 * dim * th * w_sz      # w1 tiles
            + 2 * th * w_sz            # b1 tiles
            + 2 * th * dim * w_sz      # w2 tiles
            + 2 * dim * w_sz           # b2
            + 2 * tm * dim * out_sz    # output tiles
            + tm * th * 4)             # h intermediate (f32)
    if use_acc_scratch:
        need += tm * dim * 4           # f32 accumulator scratch
    return need


# --------------------------------------------------------------------------- #
# Wrapper
# --------------------------------------------------------------------------- #
def feed_forward(x, w1, b1, w2, b2, *, block_m=None, block_h=None):
    """x: (..., dim) -> (..., dim); params per the layout contract above."""
    orig_shape = x.shape
    dim = orig_shape[-1]
    hidden = w1.shape[1]
    x2d = x.reshape(-1, dim)
    M = x2d.shape[0]

    b1_2d = b1.reshape(1, hidden)
    b2_2d = b2.reshape(1, dim)

    gen, vmem_cap, num_tc = _tpu_generation()
    def_bm, def_bh, mxu_align, headroom = _gen_defaults(gen)
    if block_m is None:
        block_m = def_bm
    if block_h is None:
        block_h = def_bh
    vmem_budget = int(vmem_cap * headroom)

    x_sz = jnp.dtype(x.dtype).itemsize
    w_sz = jnp.dtype(w1.dtype).itemsize
    out_sz = x_sz
    use_acc_scratch = x.dtype != jnp.float32   # f32 outputs accumulate in o_ref

    # ---- row (token) tile ---------------------------------------------------
    tm = min(block_m, M)
    if tm < M:
        if tm >= mxu_align:
            tm = (tm // mxu_align) * mxu_align       # keep the MXU full-width
        else:
            sub = 16 if x_sz == 2 else 8             # sublane (packing) minimum
            tm = max(sub, (tm // sub) * sub)
    # Megacore: only v7x has 2 TensorCores -> need >=2 M-steps to shard the
    # "parallel" axis.  Never split on single-TC v5e/v6e (pure overhead).
    if num_tc >= 2 and pl.cdiv(M, tm) < 2 and M >= 2 * mxu_align:
        tm = max(mxu_align, ((M // 2) // mxu_align) * mxu_align)

    # ---- hidden tile (fc2 reduction axis, last in grid) -----------------------
    th_cands = []
    if hidden <= block_h:
        th_cands.append(hidden)
    for align in (max(mxu_align, 256) if gen != "v5e" else 128, 128):
        for t in _aligned_divisors(hidden, block_h, align):
            if t not in th_cands:
                th_cands.append(t)
    if not th_cands:
        # TODO(synk): hidden has no 128-aligned divisor -> keep weights resident
        # (can exceed the v7x VMEM budget for very large hidden).
        th_cands = [hidden]
    th = th_cands[0]

    # ---- shrink th first, then tm, until the VMEM budget fits ----------------
    ci = 0
    while _vmem_need(tm, th, dim, x_sz, w_sz, out_sz, use_acc_scratch) > vmem_budget:
        if ci + 1 < len(th_cands):
            ci += 1
            th = th_cands[ci]
        elif tm > mxu_align:
            tm = max(mxu_align, ((tm // 2) // mxu_align) * mxu_align)
        elif tm > 8:
            new_tm = max(8, ((tm // 2) // 8) * 8)
            if new_tm == tm:
                break
            tm = new_tm
        else:
            break

    grid = (pl.cdiv(M, tm), pl.cdiv(hidden, th))
    num_k = grid[1]

    # ---- VMEM limit: sized from the tiles, capped at physical capacity -------
    need = _vmem_need(tm, th, dim, x_sz, w_sz, out_sz, use_acc_scratch)
    vmem_limit = int(min(max(need * 1.4, 32 * 1024 * 1024), vmem_budget))
    if need > vmem_limit:  # couldn't fit the budget; ask for what we need, capped
        vmem_limit = int(min(need * 1.15, vmem_cap * 0.95))

    # ---- serpentine k so boundary weight tiles are reused across M steps ------
    def _serp(i, k):
        return k + (i % 2) * (num_k - 1 - 2 * k)

    in_specs = [
        pl.BlockSpec((tm, dim), lambda i, k: (i, 0)),            # x (const over k)
        pl.BlockSpec((dim, th), lambda i, k: (0, _serp(i, k))),  # w1 tile
        pl.BlockSpec((1, th), lambda i, k: (0, _serp(i, k))),    # b1 tile
        pl.BlockSpec((th, dim), lambda i, k: (_serp(i, k), 0)),  # w2 tile
        pl.BlockSpec((1, dim), lambda i, k: (0, 0)),             # b2 (constant)
    ]
    out_specs = pl.BlockSpec((tm, dim), lambda i, k: (i, 0))

    if use_acc_scratch:
        kernel = _ff_kernel_scratch
        scratch_shapes = [pltpu.VMEM((tm, dim), jnp.float32)]
    else:
        kernel = _ff_kernel_f32out
        scratch_shapes = []

    # ---- advisory cost estimate for the XLA scheduler -------------------------
    weight_bytes = (dim * hidden + hidden + hidden * dim + dim) * w_sz
    cost = pl.CostEstimate(
        flops=int(4 * M * dim * hidden),
        transcendentals=int(M * hidden),
        bytes_accessed=int(M * dim * x_sz + M * dim * out_sz
                           + weight_bytes * grid[0]),
    )

    out2d = pl.pallas_call(
        kernel,
        out_shape=jax.ShapeDtypeStruct((M, dim), x.dtype),
        grid_spec=pltpu.PrefetchScalarGridSpec(
            num_scalar_prefetch=0,
            grid=grid,
            in_specs=in_specs,
            out_specs=out_specs,
            scratch_shapes=scratch_shapes,
        ),
        compiler_params=pltpu.CompilerParams(
            dimension_semantics=("parallel", "arbitrary"),
            vmem_limit_bytes=vmem_limit,
        ),
        cost_estimate=cost,
    )(x2d, w1, b1_2d, w2, b2_2d)

    return out2d.reshape(orig_shape)


# --------------------------------------------------------------------------- #
# Params / reference / self-test
# --------------------------------------------------------------------------- #
def init_params(key, dim, hidden_dim, dtype=jnp.float32):
    """Deterministic init mimicking nn.Linear's uniform(-1/sqrt(fan_in), ...)."""
    k1, k2, k3, k4 = jax.random.split(key, 4)
    bound1 = 1.0 / math.sqrt(dim)
    bound2 = 1.0 / math.sqrt(hidden_dim)
    # stored as (in, out) so the kernel does x @ w directly
    w1 = jax.random.uniform(k1, (dim, hidden_dim), dtype, -bound1, bound1)
    b1 = jax.random.uniform(k2, (hidden_dim,), dtype, -bound1, bound1)
    w2 = jax.random.uniform(k3, (hidden_dim, dim), dtype, -bound2, bound2)
    b2 = jax.random.uniform(k4, (dim,), dtype, -bound2, bound2)
    return w1, b1, w2, b2


def _reference(x, w1, b1, w2, b2):
    h = x @ w1 + b1
    h = 0.5 * h * (1.0 + jax.lax.erf(h / math.sqrt(2.0)))
    return h @ w2 + b2


if __name__ == "__main__":
    key = jax.random.PRNGKey(0)
    kx, kp = jax.random.split(key)

    # Small but lane-aligned shapes (dim/hidden multiples of 128).
    batch, seq, dim, hidden_dim = 2, 8, 128, 256
    x = jax.random.normal(kx, (batch, seq, dim), dtype=jnp.float32)
    w1, b1, w2, b2 = init_params(kp, dim, hidden_dim)

    # f32 path: parity with the PyTorch module (accumulates directly in o_ref).
    y = jax.block_until_ready(feed_forward(x, w1, b1, w2, b2))
    y_ref = _reference(x, w1, b1, w2, b2)
    assert y.shape == x.shape
    assert jnp.allclose(y, y_ref, atol=2e-3, rtol=2e-3), "f32 mismatch vs reference"

    # bf16 path: recommended deployment dtype (bf16 MXU inputs, f32 accumulate).
    xb = x.astype(jnp.bfloat16)
    w1b, b1b, w2b, b2b = (p.astype(jnp.bfloat16) for p in (w1, b1, w2, b2))
    yb = jax.block_until_ready(feed_forward(xb, w1b, b1b, w2b, b2b))
    yb_f32 = yb.astype(jnp.float32)
    assert jnp.all(jnp.isfinite(yb_f32))
    assert jnp.allclose(yb_f32, y_ref, atol=0.1, rtol=0.1), "bf16 mismatch vs reference"

    print("KERNEL_OK")
</pallas_src>

<mosaic_0001>
module attributes {stable_mosaic.version = 11 : i64} {
  func.func @_ff_kernel_f32out(%arg0: i32, %arg1: i32, %arg2: memref<16x128xf32, #tpu.memory_space<vmem>>, %arg3: memref<128x256xf32, #tpu.memory_space<vmem>>, %arg4: memref<1x256xf32, #tpu.memory_space<vmem>>, %arg5: memref<256x128xf32, #tpu.memory_space<vmem>>, %arg6: memref<1x128xf32, #tpu.memory_space<vmem>>, %arg7: memref<16x128xf32, #tpu.memory_space<vmem>>) attributes {dimension_semantics = [#tpu.dimension_semantics<parallel>, #tpu.dimension_semantics<arbitrary>], iteration_bounds = array<i64: 1, 1>, scalar_prefetch = 0 : i64, scratch_operands = 0 : i64, tpu.core_type = #tpu.core_type<tc>, window_params = [{transform_indices = @transform_0, window_bounds = array<i64: 16, 128>}, {transform_indices = @transform_1, window_bounds = array<i64: 128, 256>}, {transform_indices = @transform_2, window_bounds = array<i64: 1, 256>}, {transform_indices = @transform_3, window_bounds = array<i64: 256, 128>}, {pipeline_mode = #tpu.pipeline_mode<synchronous>, transform_indices = @transform_4, window_bounds = array<i64: 1, 128>}, {transform_indices = @transform_5, window_bounds = array<i64: 16, 128>}]} {
    %c0_i32 = arith.constant 0 : i32
    %0 = arith.cmpi eq, %arg1, %c0_i32 : i32
    %1 = arith.extui %0 : i1 to i32
    %c0_i32_0 = arith.constant 0 : i32
    %2 = arith.cmpi ne, %1, %c0_i32_0 : i32
    scf.if %2 {
      %cst_18 = arith.constant 0.000000e+00 : f32
      %25 = vector.broadcast %cst_18 : f32 to vector<16x128xf32>
      %c0_19 = arith.constant 0 : index
      %c0_20 = arith.constant 0 : index
      %26 = vector.load %arg7[%c0_19, %c0_20] : memref<16x128xf32, #tpu.memory_space<vmem>>, vector<16x128xf32>
      tpu.vector_store %arg7[%c0_19, %c0_20], %25 {strides = array<i32>} : memref<16x128xf32, #tpu.memory_space<vmem>>, vector<16x128xf32>,
    } else {
    }
    %c0 = arith.constant 0 : index
    %c0_1 = arith.constant 0 : index
    %3 = vector.load %arg7[%c0, %c0_1] : memref<16x128xf32, #tpu.memory_space<vmem>>, vector<16x128xf32>
    %c0_2 = arith.constant 0 : index
    %c0_3 = arith.constant 0 : index
    %4 = vector.load %arg2[%c0_2, %c0_3] : memref<16x128xf32, #tpu.memory_space<vmem>>, vector<16x128xf32>
    %c0_4 = arith.constant 0 : index
    %c0_5 = arith.constant 0 : index
    %5 = vector.load %arg3[%c0_4, %c0_5] : memref<128x256xf32, #tpu.memory_space<vmem>>, vector<128x256xf32>
    %cst = arith.constant dense<0.000000e+00> : vector<16x256xf32>
    %6 = tpu.matmul %4, %5, %cst {dimension_numbers = #tpu.dot_dimension_numbers<[1], [0], [0], [1], [0, 0, 1, 1], [], []>} : vector<16x128xf32>, vector<128x256xf32>, vector<16x256xf32> -> vector<16x256xf32>
    %c0_6 = arith.constant 0 : index
    %c0_7 = arith.constant 0 : index
    %7 = vector.load %arg4[%c0_6, %c0_7] : memref<1x256xf32, #tpu.memory_space<vmem>>, vector<1x256xf32>
    %8 = vector.broadcast %7 : vector<1x256xf32> to vector<16x256xf32>
    %9 = arith.addf %6, %8 : vector<16x256xf32>
    %cst_8 = arith.constant 5.000000e-01 : f32
    %10 = vector.broadcast %cst_8 : f32 to vector<16x256xf32>
    %11 = arith.mulf %10, %9 : vector<16x256xf32>
    %cst_9 = arith.constant 0.707106769 : f32
    %12 = vector.broadcast %cst_9 : f32 to vector<16x256xf32>
    %13 = arith.mulf %9, %12 : vector<16x256xf32>
    %14 = math.erf %13 : vector<16x256xf32>
    %cst_10 = arith.constant 1.000000e+00 : f32
    %15 = vector.broadcast %cst_10 : f32 to vector<16x256xf32>
    %16 = arith.addf %15, %14 : vector<16x256xf32>
    %17 = arith.mulf %11, %16 : vector<16x256xf32>
    %c0_11 = arith.constant 0 : index
    %c0_12 = arith.constant 0 : index
    %18 = vector.load %arg5[%c0_11, %c0_12] : memref<256x128xf32, #tpu.memory_space<vmem>>, vector<256x128xf32>
    %cst_13 = arith.constant dense<0.000000e+00> : vector<16x128xf32>
    %19 = tpu.matmul %17, %18, %cst_13 {dimension_numbers = #tpu.dot_dimension_numbers<[1], [0], [0], [1], [0, 0, 1, 1], [], []>} : vector<16x256xf32>, vector<256x128xf32>, vector<16x128xf32> -> vector<16x128xf32>
    %20 = arith.addf %3, %19 : vector<16x128xf32>
    %c0_14 = arith.constant 0 : index
    %c0_15 = arith.constant 0 : index
    %21 = vector.load %arg7[%c0_14, %c0_15] : memref<16x128xf32, #tpu.memory_space<vmem>>, vector<16x128xf32>
    tpu.vector_store %arg7[%c0_14, %c0_15], %20 {strides = array<i32>} : memref<16x128xf32, #tpu.memory_space<vmem>>, vector<16x128xf32>,
    %c0_i32_16 = arith.constant 0 : i32
    %22 = arith.cmpi eq, %arg1, %c0_i32_16 : i32
    %23 = arith.extui %22 : i1 to i32
    %c0_i32_17 = arith.constant 0 : i32
    %24 = arith.cmpi ne, %23, %c0_i32_17 : i32
    scf.if %24 {
      %c0_18 = arith.constant 0 : index
      %c0_19 = arith.constant 0 : index
      %25 = vector.load %arg7[%c0_18, %c0_19] : memref<16x128xf32, #tpu.memory_space<vmem>>, vector<16x128xf32>
      %c0_20 = arith.constant 0 : index
      %c0_21 = arith.constant 0 : index
      %26 = vector.load %arg6[%c0_20, %c0_21] : memref<1x128xf32, #tpu.memory_space<vmem>>, vector<1x128xf32>
      %27 = vector.broadcast %26 : vector<1x128xf32> to vector<16x128xf32>
      %28 = arith.addf %25, %27 : vector<16x128xf32>
      %c0_22 = arith.constant 0 : index
      %c0_23 = arith.constant 0 : index
      %29 = vector.load %arg7[%c0_22, %c0_23] : memref<16x128xf32, #tpu.memory_space<vmem>>, vector<16x128xf32>
      tpu.vector_store %arg7[%c0_22, %c0_23], %28 {strides = array<i32>} : memref<16x128xf32, #tpu.memory_space<vmem>>, vector<16x128xf32>,
    } else {
    }
    return
  }
  func.func @transform_0(%arg0: i32, %arg1: i32) -> (i32, i32) {
    %c0_i32 = arith.constant 0 : i32
    %c0_i32_0 = arith.constant 0 : i32
    return %arg0, %c0_i32 : i32, i32
  }
  func.func @transform_1(%arg0: i32, %arg1: i32) -> (i32, i32) {
    %c2_i32 = arith.constant 2 : i32
    %c0_i32 = arith.constant 0 : i32
    %0 = arith.cmpi eq, %c2_i32, %c0_i32 : i32
    %c1_i32 = arith.constant 1 : i32
    %1 = arith.select %0, %c1_i32, %c2_i32 : i32
    %2 = arith.remsi %arg0, %1 : i32
    %c0_i32_0 = arith.constant 0 : i32
    %3 = arith.cmpi ne, %2, %c0_i32_0 : i32
    %c0_i32_1 = arith.constant 0 : i32
    %4 = arith.cmpi slt, %2, %c0_i32_1 : i32
    %c0_i32_2 = arith.constant 0 : i32
    %5 = arith.cmpi slt, %1, %c0_i32_2 : i32
    %6 = arith.xori %4, %5 : i1
    %7 = arith.andi %6, %3 : i1
    %8 = arith.addi %2, %1 : i32
    %9 = arith.select %7, %8, %2 : i32
    %c2_i32_3 = arith.constant 2 : i32
    %10 = arith.muli %c2_i32_3, %arg1 : i32
    %c0_i32_4 = arith.constant 0 : i32
    %11 = arith.subi %c0_i32_4, %10 : i32
    %12 = arith.muli %9, %11 : i32
    %13 = arith.addi %arg1, %12 : i32
    %c0_i32_5 = arith.constant 0 : i32
    %c0_i32_6 = arith.constant 0 : i32
    return %c0_i32_5, %13 : i32, i32
  }
  func.func @transform_2(%arg0: i32, %arg1: i32) -> (i32, i32) {
    %c2_i32 = arith.constant 2 : i32
    %c0_i32 = arith.constant 0 : i32
    %0 = arith.cmpi eq, %c2_i32, %c0_i32 : i32
    %c1_i32 = arith.constant 1 : i32
    %1 = arith.select %0, %c1_i32, %c2_i32 : i32
    %2 = arith.remsi %arg0, %1 : i32
    %c0_i32_0 = arith.constant 0 : i32
    %3 = arith.cmpi ne, %2, %c0_i32_0 : i32
    %c0_i32_1 = arith.constant 0 : i32
    %4 = arith.cmpi slt, %2, %c0_i32_1 : i32
    %c0_i32_2 = arith.constant 0 : i32
    %5 = arith.cmpi slt, %1, %c0_i32_2 : i32
    %6 = arith.xori %4, %5 : i1
    %7 = arith.andi %6, %3 : i1
    %8 = arith.addi %2, %1 : i32
    %9 = arith.select %7, %8, %2 : i32
    %c2_i32_3 = arith.constant 2 : i32
    %10 = arith.muli %c2_i32_3, %arg1 : i32
    %c0_i32_4 = arith.constant 0 : i32
    %11 = arith.subi %c0_i32_4, %10 : i32
    %12 = arith.muli %9, %11 : i32
    %13 = arith.addi %arg1, %12 : i32
    %c0_i32_5 = arith.constant 0 : i32
    %c0_i32_6 = arith.constant 0 : i32
    return %c0_i32_5, %13 : i32, i32
  }
  func.func @transform_3(%arg0: i32, %arg1: i32) -> (i32, i32) {
    %c2_i32 = arith.constant 2 : i32
    %c0_i32 = arith.constant 0 : i32
    %0 = arith.cmpi eq, %c2_i32, %c0_i32 : i32
    %c1_i32 = arith.constant 1 : i32
    %1 = arith.select %0, %c1_i32, %c2_i32 : i32
    %2 = arith.remsi %arg0, %1 : i32
    %c0_i32_0 = arith.constant 0 : i32
    %3 = arith.cmpi ne, %2, %c0_i32_0 : i32
    %c0_i32_1 = arith.constant 0 : i32
    %4 = arith.cmpi slt, %2, %c0_i32_1 : i32
    %c0_i32_2 = arith.constant 0 : i32
    %5 = arith.cmpi slt, %1, %c0_i32_2 : i32
    %6 = arith.xori %4, %5 : i1
    %7 = arith.andi %6, %3 : i1
    %8 = arith.addi %2, %1 : i32
    %9 = arith.select %7, %8, %2 : i32
    %c2_i32_3 = arith.constant 2 : i32
    %10 = arith.muli %c2_i32_3, %arg1 : i32
    %c0_i32_4 = arith.constant 0 : i32
    %11 = arith.subi %c0_i32_4, %10 : i32
    %12 = arith.muli %9, %11 : i32
    %13 = arith.addi %arg1, %12 : i32
    %c0_i32_5 = arith.constant 0 : i32
    %c0_i32_6 = arith.constant 0 : i32
    return %13, %c0_i32_5 : i32, i32
  }
  func.func @transform_4(%arg0: i32, %arg1: i32) -> (i32, i32) {
    %c0_i32 = arith.constant 0 : i32
    %c0_i32_0 = arith.constant 0 : i32
    %c0_i32_1 = arith.constant 0 : i32
    return %c0_i32, %c0_i32_0 : i32, i32
  }
  func.func @transform_5(%arg0: i32, %arg1: i32) -> (i32, i32) {
    %c0_i32 = arith.constant 0 : i32
    %c0_i32_0 = arith.constant 0 : i32
    return %arg0, %c0_i32 : i32, i32
  }
}

</mosaic_0001>

<llo_original>
// kernel: tpu_custom_call.1
$region0: #{tpu_custom_call.1}
  #allocation0 [shape = 'u32[]', space=smem, size = 0x4, offset = 0x4, fixed_abs, tag = 'smem constant byte address 0x4 - core index']
  #allocation1 [shape = 'u32[144,128]{1,0:T(1,128)}', space=vmem, size = 0x12000, scoped, tag = 'internal scratch']
  %s0 = inlined_call_operand.hbm [shape: f32[16,128], index: 0, kind: input, shape index: {}]
  %s1 = inlined_call_operand.hbm [shape: f32[128,256], index: 1, kind: input, shape index: {}]
  %s2 = inlined_call_operand.vmem [shape: f32[1,256], index: 2, kind: input, shape index: {}]
  %s3 = inlined_call_operand.hbm [shape: f32[256,128], index: 3, kind: input, shape index: {}]
  %s4 = inlined_call_operand.vmem [shape: f32[1,128], index: 4, kind: input, shape index: {}]
  %s5 = inlined_call_operand.hbm [shape: f32[16,128], index: 5, kind: output, shape index: {}]
  %s6 = sld [smem:[#allocation0]]
  $region50: #{tpu_custom_call.1} parent=0
    _
  %s8 = ssub.s32 1, %s6
  %s9 = scalar_select 0, %s8, %s6
  $region1: #{tpu_custom_call.1} parent=0
    #allocation2 [shape = 'u8[8192]{0}', space=vmem, size = 0x2000, scoped, tag = 'input window, operand 0, single buffered']
    #allocation3 [shape = 's32[1]{0}', space=sflag, size = 0x4, scoped, tag = 'scoped memory for tpu_custom_call.1']
    #allocation4 [shape = 's32[1]{0}', space=sflag, size = 0x4, scoped, tag = 'scoped memory for tpu_custom_call.1']
    #allocation5 [shape = 'u8[131072]{0}', space=vmem, size = 0x20000, scoped, tag = 'input window, operand 1, single buffered']
    #allocation6 [shape = 's32[1]{0}', space=sflag, size = 0x4, scoped, tag = 'scoped memory for tpu_custom_call.1']
    #allocation7 [shape = 'u8[131072]{0}', space=vmem, size = 0x20000, scoped, tag = 'input window, operand 3, single buffered']
    #allocation8 [shape = 'u8[8192]{0}', space=vmem, size = 0x2000, scoped, tag = 'output window, operand 0, single buffered']
    %10 = vsyncpa [#allocation3], 0
    %11 = vsyncpa [#allocation6], 0
    %12 = vsyncpa [#allocation4], 0
    // Predicated region
    $region2: #{tpu_custom_call.1} parent=1 // pred_check
      _
    $region3: #{tpu_custom_call.1} parent=1 // pred_check_branch
      %14 = sbr.rel (0) target = $region5
    $region4: #{tpu_custom_call.1} parent=1 // pred_region
      %s16 = ssub.s32 256, 256
      %17 = vsyncadd [#allocation3], %s16
      %s18 = sshll.u32 [#allocation2], 4
      %s19 = int_to_ptr.vmem [resolvable:$true] %s18
      %24 = dma.hbm_to_vmem [thread:$0]  %s0, 256, %s19, [#allocation3], 128, 128, 8
    $region5: #{tpu_custom_call.1} parent=1 // pred_fallthru
      _
    // Predicated region
    $region6: #{tpu_custom_call.1} parent=1 // pred_check
      _
    $region7: #{tpu_custom_call.1} parent=1 // pred_check_branch
      %26 = sbr.rel (0) target = $region9
    $region8: #{tpu_custom_call.1} parent=1 // pred_region
      %s27 = ssub.s32 0, 0
      %s28 = ssub.s32 0, 0
      %p29 = scmp.ne.s32.totalorder 0, 0
      %p30 = scmp.lt.s32.totalorder 0, 0
      %p31 = pnand %p30, %p29
      %p32 = pneg %p31
      %s33 = sadd.s32 0, 2
      %s34 = scalar_select %p32, %s33, 0
      %s35 = smul.u32 0, 2
      %s36 = ssub.s32 0, %s35
      %s37 = smul.u32 %s34, %s36
      %s38 = sadd.s32 0, %s37
      %s39 = smul.u32 2, %s38
      %s41 = ssub.s32 4096, 4096
      %42 = vsyncadd [#allocation6], %s41
      %s43 = smul.addr %s39, 128
      %s44 = scalar_lea.hbm %s1, %s43
      %s45 = sshll.u32 [#allocation5], 4
      %s46 = int_to_ptr.vmem [resolvable:$true] %s45
      %51 = dma.hbm_to_vmem [thread:$0]  %s44, 4096, %s46, [#allocation6], 256, 256, 16
    $region9: #{tpu_custom_call.1} parent=1 // pred_fallthru
      _
    // Predicated region
    $region10: #{tpu_custom_call.1} parent=1 // pred_check
      _
    $region11: #{tpu_custom_call.1} parent=1 // pred_check_branch
      %53 = sbr.rel (0) target = $region13
    $region12: #{tpu_custom_call.1} parent=1 // pred_region
      %s54 = ssub.s32 0, 0
      %s55 = ssub.s32 0, 0
      %p56 = scmp.ne.s32.totalorder 0, 0
      %p57 = scmp.lt.s32.totalorder 0, 0
      %p58 = pnand %p57, %p56
      %p59 = pneg %p58
      %s60 = sadd.s32 0, 2
      %s61 = scalar_select %p59, %s60, 0
      %s62 = smul.u32 0, 2
      %s63 = ssub.s32 0, %s62
      %s64 = smul.u32 %s61, %s63
      %s65 = sadd.s32 0, %s64
      %s66 = smul.u32 2, %s65
      %p67 = scmp.lt.s32.totalorder %s66, 1
      %s68 = scalar_select %p67, %s66, 1
      %s69 = scalar_lea.vmem %s2, %s68
      %s70 = ssub.s32 0, 0
      %s71 = ssub.s32 0, 0
      %p72 = scmp.ne.s32.totalorder 0, 0
      %p73 = scmp.lt.s32.totalorder 0, 0
      %p74 = pnand %p73, %p72
      %p75 = pneg %p74
      %s76 = sadd.s32 0, 2
      %s77 = scalar_select %p75, %s76, 0
      %s78 = smul.u32 0, 2
      %s79 = ssub.s32 0, %s78
      %s80 = smul.u32 %s77, %s79
      %s81 = sadd.s32 0, %s80
      %s82 = smul.u32 2, %s81
    $region13: #{tpu_custom_call.1} parent=1 // pred_fallthru
      _
    // Predicated region
    $region14: #{tpu_custom_call.1} parent=1 // pred_check
      _
    $region15: #{tpu_custom_call.1} parent=1 // pred_check_branch
      %84 = sbr.rel (0) target = $region17
    $region16: #{tpu_custom_call.1} parent=1 // pred_region
      %s85 = ssub.s32 0, 0
      %s86 = ssub.s32 0, 0
      %p87 = scmp.ne.s32.totalorder 0, 0
      %p88 = scmp.lt.s32.totalorder 0, 0
      %p89 = pnand %p88, %p87
      %p90 = pneg %p89
      %s91 = sadd.s32 0, 2
      %s92 = scalar_select %p90, %s91, 0
      %s93 = smul.u32 0, 2
      %s94 = ssub.s32 0, %s93
      %s95 = smul.u32 %s92, %s94
      %s96 = sadd.s32 0, %s95
      %s97 = smul.u32 32, %s96
      %s99 = ssub.s32 4096, 4096
      %100 = vsyncadd [#allocation6], %s99
      %s101 = smul.addr %s97, 128
      %s102 = scalar_lea.hbm %s3, %s101
      %s103 = sshll.u32 [#allocation7], 4
      %s104 = int_to_ptr.vmem [resolvable:$true] %s103
      %109 = dma.hbm_to_vmem [thread:$0]  %s102, 4096, %s104, [#allocation6], 128, 128, 8
    $region17: #{tpu_custom_call.1} parent=1 // pred_fallthru
      _
    // Predicated region
    $region18: #{tpu_custom_call.1} parent=1 // pred_check
      _
    $region19: #{tpu_custom_call.1} parent=1 // pred_check_branch
      %111 = sbr.rel (0) target = $region21
    $region20: #{tpu_custom_call.1} parent=1 // pred_region
      _
    $region21: #{tpu_custom_call.1} parent=1 // pred_fallthru
      _
    // Predicated region
    $region22: #{tpu_custom_call.1} parent=1 // pred_check
      _
    $region23: #{tpu_custom_call.1} parent=1 // pred_check_branch
      %113 = sbr.rel (0) target = $region25
    $region24: #{tpu_custom_call.1} parent=1 // pred_region
      %114 = dma.done [#allocation3], 256
    $region25: #{tpu_custom_call.1} parent=1 // pred_fallthru
      _
    // Predicated region
    $region26: #{tpu_custom_call.1} parent=1 // pred_check
      _
    $region27: #{tpu_custom_call.1} parent=1 // pred_check_branch
      %116 = sbr.rel (0) target = $region29
    $region28: #{tpu_custom_call.1} parent=1 // pred_region
      %117 = dma.done [#allocation6], 4096
    $region29: #{tpu_custom_call.1} parent=1 // pred_fallthru
      _
    // Predicated region
    $region30: #{tpu_custom_call.1} parent=1 // pred_check
      _
    $region31: #{tpu_custom_call.1} parent=1 // pred_check_branch
      %119 = sbr.rel (0) target = $region33
    $region32: #{tpu_custom_call.1} parent=1 // pred_region
      %120 = dma.done [#allocation6], 4096
    $region33: #{tpu_custom_call.1} parent=1 // pred_fallthru
      _
    %s121 = ssub.s32 0, 0
    %s122 = ssub.s32 0, 0
    %p123 = scmp.ne.s32.totalorder 0, 0
    %p124 = scmp.lt.s32.totalorder 0, 0
    %p125 = pnand %p124, %p123
    %p126 = pneg %p125
    %s127 = sadd.s32 0, 2
    %s128 = scalar_select %p126, %s127, 0
    %s129 = smul.u32 0, 2
    %s130 = ssub.s32 0, %s129
    %s131 = smul.u32 %s128, %s130
    %s132 = sadd.s32 0, %s131
    %s133 = smul.u32 2, %s132
    %p134 = scmp.lt.s32.totalorder %s133, 1
    %s135 = scalar_select %p134, %s133, 1
    %s136 = scalar_lea.vmem %s2, %s135
    %s137 = ssub.s32 0, 0
    %s138 = ssub.s32 0, 0
    %p139 = scmp.ne.s32.totalorder 0, 0
    %p140 = scmp.lt.s32.totalorder 0, 0
    %p141 = pnand %p140, %p139
    %p142 = pneg %p141
    %s143 = sadd.s32 0, 2
    %s144 = scalar_select %p142, %s143, 0
    %s145 = smul.u32 0, 2
    %s146 = ssub.s32 0, %s145
    %s147 = smul.u32 %s144, %s146
    %s148 = sadd.s32 0, %s147
    %s149 = smul.u32 2, %s148
    %s150 = ssub.s32 0, 0
    %s151 = ssub.s32 0, 0
    %p152 = scmp.ne.s32.totalorder 0, 0
    %p153 = scmp.lt.s32.totalorder 0, 0
    %p154 = pnand %p153, %p152
    %p155 = pneg %p154
    %s156 = sadd.s32 0, 2
    %s157 = scalar_select %p155, %s156, 0
    %s158 = smul.u32 0, 2
    %s159 = ssub.s32 0, %s158
    %s160 = smul.u32 %s157, %s159
    %s161 = sadd.s32 0, %s160
    %s162 = smul.u32 2, %s161
    %p163 = scmp.lt.s32.totalorder %s162, 1
    %s164 = scalar_select %p163, %s162, 1
    %s165 = scalar_lea.vmem %s2, %s164
    %s166 = ssub.s32 0, 0
    %s167 = ssub.s32 0, 0
    %p168 = scmp.ne.s32.totalorder 0, 0
    %p169 = scmp.lt.s32.totalorder 0, 0
    %p170 = pnand %p169, %p168
    %p171 = pneg %p170
    %s172 = sadd.s32 0, 2
    %s173 = scalar_select %p171, %s172, 0
    %s174 = smul.u32 0, 2
    %s175 = ssub.s32 0, %s174
    %s176 = smul.u32 %s173, %s175
    %s177 = sadd.s32 0, %s176
    %s178 = smul.u32 2, %s177
    %s179 = ssub.s32 0, 0
    %s180 = ssub.s32 0, 0
    %p181 = scmp.ne.s32.totalorder 0, 0
    %p182 = scmp.lt.s32.totalorder 0, 0
    %p183 = pnand %p182, %p181
    %p184 = pneg %p183
    %s185 = sadd.s32 0, 2
    %s186 = scalar_select %p184, %s185, 0
    %s187 = smul.u32 0, 2
    %s188 = ssub.s32 0, %s187
    %s189 = smul.u32 %s186, %s188
    %s190 = sadd.s32 0, %s189
    %s191 = smul.u32 32, %s190
    %p192 = scmp.eq.s32.totalorder 0, 0
    // Predicated region
    $region34: #{tpu_custom_call.1} parent=1 // pred_check
      %p193 = pneg %p192
    $region35: #{tpu_custom_call.1} parent=1 // pred_check_branch
      %195 = sbr.rel (%p193) target = $region37
    $region36: #{tpu_custom_call.1} parent=1 // pred_region
      %196 = vst [vmem:[#allocation8] sm:$0xff] 0.0
      %197 = vst [vmem:[#allocation8 + $0x8] sm:$0xff] 0.0
    $region37: #{tpu_custom_call.1} parent=1 // pred_fallthru
      _
    %v198 = vld [vmem:[#allocation8] sm:$0xff]
    %v199 = vld [vmem:[#allocation8 + $0x8] sm:$0xff]
    %v200 = vld [vmem:[#allocation2] sm:$0xff]
    %v201 = vld [vmem:[#allocation2 + $0x8] sm:$0xff]
    %v202 = vld [vmem:[#allocation5] sm:$0xff]
    %v203 = vld [vmem:[#allocation5 + $0x8] sm:$0xff]
    %v204 = vld [vmem:[#allocation5 + $0x10] sm:$0xff]
    %v205 = vld [vmem:[#allocation5 + $0x18] sm:$0xff]
    %v206 = vld [vmem:[#allocation5 + $0x20] sm:$0xff]
    %v207 = vld [vmem:[#allocation5 + $0x28] sm:$0xff]
    %v208 = vld [vmem:[#allocation5 + $0x30] sm:$0xff]
    %v209 = vld [vmem:[#allocation5 + $0x38] sm:$0xff]
    %v210 = vld [vmem:[#allocation5 + $0x40] sm:$0xff]
    %v211 = vld [vmem:[#allocation5 + $0x48] sm:$0xff]
    %v212 = vld [vmem:[#allocation5 + $0x50] sm:$0xff]
    %v213 = vld [vmem:[#allocation5 + $0x58] sm:$0xff]
    %v214 = vld [vmem:[#allocation5 + $0x60] sm:$0xff]
    %v215 = vld [vmem:[#allocation5 + $0x68] sm:$0xff]
    %v216 = vld [vmem:[#allocation5 + $0x70] sm:$0xff]
    %v217 = vld [vmem:[#allocation5 + $0x78] sm:$0xff]
    %v218 = vld [vmem:[#allocation5 + $0x80] sm:$0xff]
    %v219 = vld [vmem:[#allocation5 + $0x88] sm:$0xff]
    %v220 = vld [vmem:[#allocation5 + $0x90] sm:$0xff]
    %v221 = vld [vmem:[#allocation5 + $0x98] sm:$0xff]
    %v222 = vld [vmem:[#allocation5 + $0xa0] sm:$0xff]
    %v223 = vld [vmem:[#allocation5 + $0xa8] sm:$0xff]
    %v224 = vld [vmem:[#allocation5 + $0xb0] sm:$0xff]
    %v225 = vld [vmem:[#allocation5 + $0xb8] sm:$0xff]
    %v226 = vld [vmem:[#allocation5 + $0xc0] sm:$0xff]
    %v227 = vld [vmem:[#allocation5 + $0xc8] sm:$0xff]
    %v228 = vld [vmem:[#allocation5 + $0xd0] sm:$0xff]
    %v229 = vld [vmem:[#allocation5 + $0xd8] sm:$0xff]
    %v230 = vld [vmem:[#allocation5 + $0xe0] sm:$0xff]
    %v231 = vld [vmem:[#allocation5 + $0xe8] sm:$0xff]
    %v232 = vld [vmem:[#allocation5 + $0xf0] sm:$0xff]
    %v233 = vld [vmem:[#allocation5 + $0xf8] sm:$0xff]
    %v234 = vld [vmem:[%s165] sm:$0x3]
    %v236 = vlaneseq
    %v237 = vshrl.u32 %v236, 7
    %v238 = vsub.s32 0, %v237
    %v239 = vrot.slane %v234, %v238
    %v240 = vlaneseq
    %v241 = vshrl.u32 %v240, 7
    %v242 = vsub.s32 1, %v241
    %v243 = vrot.slane %v234, %v242
    %246 = vmatprep.subr.mxu0 %v203
    %247 = vmatpush1.msra.mxu0 %v202
    %248 = vmatprep.subr.mxu0 %v205
    %249 = vmatpush1.msra.mxu0 %v204
    %250 = vmatprep.subr.mxu0 %v207
    %251 = vmatpush1.msra.mxu0 %v206
    %252 = vmatprep.subr.mxu0 %v209
    %253 = vmatpush1.msra.mxu0 %v208
    %254 = vmatprep.subr.mxu0 %v211
    %255 = vmatpush1.msra.mxu0 %v210
    %256 = vmatprep.subr.mxu0 %v213
    %257 = vmatpush1.msra.mxu0 %v212
    %258 = vmatprep.subr.mxu0 %v215
    %259 = vmatpush1.msra.mxu0 %v214
    %260 = vmatprep.subr.mxu0 %v217
    %261 = vmatpush1.msra.mxu0 %v216
    %262 = vmatprep.subr.mxu0 %v219
    %263 = vmatpush1.msra.mxu0 %v218
    %264 = vmatprep.subr.mxu0 %v221
    %265 = vmatpush1.msra.mxu0 %v220
    %266 = vmatprep.subr.mxu0 %v223
    %267 = vmatpush1.msra.mxu0 %v222
    %268 = vmatprep.subr.mxu0 %v225
    %269 = vmatpush1.msra.mxu0 %v224
    %270 = vmatprep.subr.mxu0 %v227
    %271 = vmatpush1.msra.mxu0 %v226
    %272 = vmatprep.subr.mxu0 %v229
    %273 = vmatpush1.msra.mxu0 %v228
    %274 = vmatprep.subr.mxu0 %v231
    %275 = vmatpush1.msra.mxu0 %v230
    %276 = vmatprep.subr.mxu0 %v233
    %277 = vmatpush1.msra.mxu0 %v232
    %278 = vmatprep.subr.mxu0 0.0
    %279 = vmatpush1.msra.mxu0 0.0
    %280 = vmatprep.subr.mxu0 0.0
    %281 = vmatpush1.msra.mxu0 0.0
    %282 = vmatprep.subr.mxu0 0.0
    %283 = vmatpush1.msra.mxu0 0.0
    %284 = vmatprep.subr.mxu0 0.0
    %285 = vmatpush1.msra.mxu0 0.0
    %286 = vmatprep.subr.mxu0 0.0
    %287 = vmatpush1.msra.mxu0 0.0
    %288 = vmatprep.subr.mxu0 0.0
    %289 = vmatpush1.msra.mxu0 0.0
    %290 = vmatprep.subr.mxu0 0.0
    %291 = vmatpush1.msra.mxu0 0.0
    %292 = vmatprep.subr.mxu0 0.0
    %293 = vmatpush1.msra.mxu0 0.0
    %294 = vmatprep.subr.mxu0 0.0
    %295 = vmatpush1.msra.mxu0 0.0
    %296 = vmatprep.subr.mxu0 0.0
    %297 = vmatpush1.msra.mxu0 0.0
    %298 = vmatprep.subr.mxu0 0.0
    %299 = vmatpush1.msra.mxu0 0.0
    %300 = vmatprep.subr.mxu0 0.0
    %301 = vmatpush1.msra.mxu0 0.0
    %302 = vmatprep.subr.mxu0 0.0
    %303 = vmatpush1.msra.mxu0 0.0
    %304 = vmatprep.subr.mxu0 0.0
    %305 = vmatpush1.msra.mxu0 0.0
    %306 = vmatprep.subr.mxu0 0.0
    %307 = vmatpush1.msra.mxu0 0.0
    %308 = vmatprep.subr.mxu0 0.0
    %309 = vmatpush1.msra.mxu0 0.0
    %310 = vmatprep.mubr.f32.mxu0 0.0
    %311 = vmatmul.mubr.f32.gmra.mrb[0].mxu0 %v200
    %v312 = vpop.f32.mrb[0].mxu0
    %v313 = vadd.f32 %v239, %v312
    %v314 = vpop.f32.mrb[0].mxu0
    %v315 = vadd.f32 %v243, %v314
    %316 = vmatprep.mubr.f32.mxu0 0.0
    %317 = vmatmul.mubr.f32.gmra.mrb[0].mxu0 %v201
    %v318 = vpop.f32.mrb[0].mxu0
    %v319 = vadd.f32 %v239, %v318
    %v320 = vpop.f32.mrb[0].mxu0
    %v321 = vadd.f32 %v243, %v320
    %322 = vdwg.mxu0
    %v323 = vmul.f32 %v313, 0.5
    %v324 = vmul.f32 %v315, 0.5
    %v325 = vmul.f32 %v319, 0.5
    %v326 = vmul.f32 %v321, 0.5
    %v327 = vmul.f32 %v313, 0.70710677
    %v328 = vmul.f32 %v315, 0.70710677
    %v329 = vmul.f32 %v319, 0.70710677
    %v330 = vmul.f32 %v321, 0.70710677
    %v331 = verf.f32.pop %v327
    %v332 = verf.f32.pop %v328
    %v333 = verf.f32.pop %v329
    %v334 = verf.f32.pop %v330
    %v335 = vadd.f32 %v331, 1.0
    %v336 = vadd.f32 %v332, 1.0
    %v337 = vadd.f32 %v333, 1.0
    %v338 = vadd.f32 %v334, 1.0
    %v339 = vmul.f32 %v323, %v335
    %v340 = vmul.f32 %v324, %v336
    %v341 = vmul.f32 %v325, %v337
    %v342 = vmul.f32 %v326, %v338
    %v343 = vld [vmem:[#allocation7] sm:$0xff]
    %v344 = vld [vmem:[#allocation7 + $0x8] sm:$0xff]
    %v345 = vld [vmem:[#allocation7 + $0x10] sm:$0xff]
    %v346 = vld [vmem:[#allocation7 + $0x18] sm:$0xff]
    %v347 = vld [vmem:[#allocation7 + $0x20] sm:$0xff]
    %v348 = vld [vmem:[#allocation7 + $0x28] sm:$0xff]
    %v349 = vld [vmem:[#allocation7 + $0x30] sm:$0xff]
    %v350 = vld [vmem:[#allocation7 + $0x38] sm:$0xff]
    %v351 = vld [vmem:[#allocation7 + $0x40] sm:$0xff]
    %v352 = vld [vmem:[#allocation7 + $0x48] sm:$0xff]
    %v353 = vld [vmem:[#allocation7 + $0x50] sm:$0xff]
    %v354 = vld [vmem:[#allocation7 + $0x58] sm:$0xff]
    %v355 = vld [vmem:[#allocation7 + $0x60] sm:$0xff]
    %v356 = vld [vmem:[#allocation7 + $0x68] sm:$0xff]
    %v357 = vld [vmem:[#allocation7 + $0x70] sm:$0xff]
    %v358 = vld [vmem:[#allocation7 + $0x78] sm:$0xff]
    %v359 = vld [vmem:[#allocation7 + $0x80] sm:$0xff]
    %v360 = vld [vmem:[#allocation7 + $0x88] sm:$0xff]
    %v361 = vld [vmem:[#allocation7 + $0x90] sm:$0xff]
    %v362 = vld [vmem:[#allocation7 + $0x98] sm:$0xff]
    %v363 = vld [vmem:[#allocation7 + $0xa0] sm:$0xff]
    %v364 = vld [vmem:[#allocation7 + $0xa8] sm:$0xff]
    %v365 = vld [vmem:[#allocation7 + $0xb0] sm:$0xff]
    %v366 = vld [vmem:[#allocation7 + $0xb8] sm:$0xff]
    %v367 = vld [vmem:[#allocation7 + $0xc0] sm:$0xff]
    %v368 = vld [vmem:[#allocation7 + $0xc8] sm:$0xff]
    %v369 = vld [vmem:[#allocation7 + $0xd0] sm:$0xff]
    %v370 = vld [vmem:[#allocation7 + $0xd8] sm:$0xff]
    %v371 = vld [vmem:[#allocation7 + $0xe0] sm:$0xff]
    %v372 = vld [vmem:[#allocation7 + $0xe8] sm:$0xff]
    %v373 = vld [vmem:[#allocation7 + $0xf0] sm:$0xff]
    %v374 = vld [vmem:[#allocation7 + $0xf8] sm:$0xff]
    %375 = vmatprep.subr.mxu0 0.0
    %376 = vmatpush1.msra.mxu0 %v343
    %377 = vmatprep.subr.mxu0 0.0
    %378 = vmatpush1.msra.mxu0 %v344
    %379 = vmatprep.subr.mxu0 0.0
    %380 = vmatpush1.msra.mxu0 %v345
    %381 = vmatprep.subr.mxu0 0.0
    %382 = vmatpush1.msra.mxu0 %v346
    %383 = vmatprep.subr.mxu0 0.0
    %384 = vmatpush1.msra.mxu0 %v347
    %385 = vmatprep.subr.mxu0 0.0
    %386 = vmatpush1.msra.mxu0 %v348
    %387 = vmatprep.subr.mxu0 0.0
    %388 = vmatpush1.msra.mxu0 %v349
    %389 = vmatprep.subr.mxu0 0.0
    %390 = vmatpush1.msra.mxu0 %v350
    %391 = vmatprep.subr.mxu0 0.0
    %392 = vmatpush1.msra.mxu0 %v351
    %393 = vmatprep.subr.mxu0 0.0
    %394 = vmatpush1.msra.mxu0 %v352
    %395 = vmatprep.subr.mxu0 0.0
    %396 = vmatpush1.msra.mxu0 %v353
    %397 = vmatprep.subr.mxu0 0.0
    %398 = vmatpush1.msra.mxu0 %v354
    %399 = vmatprep.subr.mxu0 0.0
    %400 = vmatpush1.msra.mxu0 %v355
    %401 = vmatprep.subr.mxu0 0.0
    %402 = vmatpush1.msra.mxu0 %v356
    %403 = vmatprep.subr.mxu0 0.0
    %404 = vmatpush1.msra.mxu0 %v357
    %405 = vmatprep.subr.mxu0 0.0
    %406 = vmatpush1.msra.mxu0 %v358
    %407 = vmatprep.subr.mxu0 0.0
    %408 = vmatpush1.msra.mxu0 %v359
    %409 = vmatprep.subr.mxu0 0.0
    %410 = vmatpush1.msra.mxu0 %v360
    %411 = vmatprep.subr.mxu0 0.0
    %412 = vmatpush1.msra.mxu0 %v361
    %413 = vmatprep.subr.mxu0 0.0
    %414 = vmatpush1.msra.mxu0 %v362
    %415 = vmatprep.subr.mxu0 0.0
    %416 = vmatpush1.msra.mxu0 %v363
    %417 = vmatprep.subr.mxu0 0.0
    %418 = vmatpush1.msra.mxu0 %v364
    %419 = vmatprep.subr.mxu0 0.0
    %420 = vmatpush1.msra.mxu0 %v365
    %421 = vmatprep.subr.mxu0 0.0
    %422 = vmatpush1.msra.mxu0 %v366
    %423 = vmatprep.subr.mxu0 0.0
    %424 = vmatpush1.msra.mxu0 %v367
    %425 = vmatprep.subr.mxu0 0.0
    %426 = vmatpush1.msra.mxu0 %v368
    %427 = vmatprep.subr.mxu0 0.0
    %428 = vmatpush1.msra.mxu0 %v369
    %429 = vmatprep.subr.mxu0 0.0
    %430 = vmatpush1.msra.mxu0 %v370
    %431 = vmatprep.subr.mxu0 0.0
    %432 = vmatpush1.msra.mxu0 %v371
    %433 = vmatprep.subr.mxu0 0.0
    %434 = vmatpush1.msra.mxu0 %v372
    %435 = vmatprep.subr.mxu0 0.0
    %436 = vmatpush1.msra.mxu0 %v373
    %437 = vmatprep.subr.mxu0 0.0
    %438 = vmatpush1.msra.mxu0 %v374
    %439 = vmatprep.mubr.f32.mxu0 %v340
    %440 = vmatmul.mubr.f32.gmra.mrb[0].mxu0 %v339
    %v441 = vpop.f32.mrb[0].mxu0
    %v442 = vadd.f32 0.0, %v441
    %v443 = vpop.f32.mrb[0].mxu0
    %444 = vmatprep.mubr.f32.mxu0 %v342
    %445 = vmatmul.mubr.f32.gmra.mrb[0].mxu0 %v341
    %v446 = vpop.f32.mrb[0].mxu0
    %v447 = vadd.f32 0.0, %v446
    %v448 = vpop.f32.mrb[0].mxu0
    %449 = vdwg.mxu0
    %v450 = vadd.f32 %v198, %v442
    %v451 = vadd.f32 %v199, %v447
    %452 = vst [vmem:[#allocation8] sm:$0xff] %v450
    %453 = vst [vmem:[#allocation8 + $0x8] sm:$0xff] %v451
    // Predicated region
    $region38: #{tpu_custom_call.1} parent=1 // pred_check
      %p454 = pneg %p192
    $region39: #{tpu_custom_call.1} parent=1 // pred_check_branch
      %456 = sbr.rel (%p454) target = $region41
    $region40: #{tpu_custom_call.1} parent=1 // pred_region
      %v457 = vld [vmem:[#allocation8] sm:$0xff]
      %v458 = vld [vmem:[#allocation8 + $0x8] sm:$0xff]
      %v459 = vld [vmem:[%s4] sm:$0x1]
      %v461 = vlaneseq
      %v462 = vshrl.u32 %v461, 7
      %v463 = vsub.s32 0, %v462
      %v464 = vrot.slane %v459, %v463
      %v466 = vadd.f32 %v457, %v464
      %v467 = vadd.f32 %v458, %v464
      %468 = vst [vmem:[#allocation8] sm:$0xff] %v466
      %469 = vst [vmem:[#allocation8 + $0x8] sm:$0xff] %v467
    $region41: #{tpu_custom_call.1} parent=1 // pred_fallthru
      _
    // Predicated region
    $region42: #{tpu_custom_call.1} parent=1 // pred_check
      _
    $region43: #{tpu_custom_call.1} parent=1 // pred_check_branch
      %471 = sbr.rel (0) target = $region45
    $region44: #{tpu_custom_call.1} parent=1 // pred_region
      %s473 = ssub.s32 256, 256
      %474 = vsyncadd [#allocation4], %s473
      %s475 = sshll.u32 [#allocation8], 4
      %s476 = int_to_ptr.vmem [resolvable:$true] %s475
      %481 = dma.vmem_to_hbm [thread:$0]  %s476, 256, %s5, [#allocation4], 128, 128, 8
    $region45: #{tpu_custom_call.1} parent=1 // pred_fallthru
      _
    // Predicated region
    $region46: #{tpu_custom_call.1} parent=1 // pred_check
      _
    $region47: #{tpu_custom_call.1} parent=1 // pred_check_branch
      %483 = sbr.rel (0) target = $region49
    $region48: #{tpu_custom_call.1} parent=1 // pred_region
      %484 = dma.done [#allocation4], 256
    $region49: #{tpu_custom_call.1} parent=1 // pred_fallthru
      _
    %485 = vsyncpa [#allocation3], 1
    %486 = vsyncpa [#allocation6], 1
    %487 = vsyncpa [#allocation4], 1

</llo_original>
